<compile_context>
chip_gen: v6e
topology: v6e:2x2x1
jax: 0.10.0
libtpu: 0.0.40
codegen_flags: <defaults>
</compile_context>

<pallas_src>
import jax
import jax.numpy as jnp
from jax import lax
from jax.experimental import pallas as pl
from jax.experimental.pallas import tpu as pltpu

# ----------------------------- toy problem sizes ---------------------------
N    = 32          # nodes per view (x / pos / neg)
F_IN = 32          # raw feature dim (after preprocess_features)
H    = 32          # hyper_params.output_dim ; enc_dims = [F, H, H]

LANE = 128         # TPU lane width
FP   = LANE        # feature dim, zero-padded lane-dense
HP   = LANE        # hidden/output dim, zero-padded lane-dense


# ---------------------------------------------------------------------------
# Single fused kernel:
#   feats (3N, FP) = [x; pos; neg]  (raw features, zero-padded)
#   1) preprocess_features: divide each row by its row-sum
#   2) encoder: relu(feats @ W1 + b1) @ W2 + b2, then row L2-normalize (nce)
#   3) split into hx / [hpos; hneg], discriminator (outer=True):
#        S = (hx @ Wd) @ [hpos; hneg]^T          -> (N, 2N)
#   4) loss = mean(softplus(-S_pos)) + mean(softplus(S_neg))  -> SMEM scalar
# ---------------------------------------------------------------------------
def fused_forward_kernel(feats_ref, w1_ref, b1_ref, w2_ref, b2_ref, wd_ref,
                         loss_ref):
    feats = feats_ref[...]                                  # (3N, FP) f32

    # --- preprocess_features: row-normalize by plain row sum (guard /0) ----
    rs = jnp.sum(feats, axis=-1, keepdims=True)             # (3N, 1)
    feats = feats / jnp.where(rs == 0.0, 1.0, rs)

    # --- encoder (2-layer MLP) + F.normalize(dim=-1)  (est == 'nce') -------
    h = jnp.dot(feats, w1_ref[...], preferred_element_type=jnp.float32)
    h = jnp.maximum(h + b1_ref[...], 0.0)                   # ReLU
    h = jnp.dot(h, w2_ref[...], preferred_element_type=jnp.float32)
    h = h + b2_ref[...]                                     # (3N, HP)
    inv_norm = lax.rsqrt(jnp.sum(h * h, axis=-1, keepdims=True) + 1e-12)
    h = h * inv_norm

    # --- split stacked embeddings (static, sublane-aligned slices) ---------
    hx  = h[0 * N:1 * N, :]                                 # embed(x)      (N, HP)
    hpn = h[1 * N:3 * N, :]                                 # [embed(pos); embed(neg)] (2N, HP)

    # --- discriminator (mask=False path: hxp = hxn = hx, outer=True) -------
    hxw = jnp.dot(hx, wd_ref[...], preferred_element_type=jnp.float32)
    # Single NT matmul against the stacked pos/neg block: contract the shared
    # last dim, no materialized transpose.  Columns [0, N) = S_pos, [N, 2N) = S_neg.
    dn = (((1,), (1,)), ((), ()))
    s = lax.dot_general(hxw, hpn, dn,
                        preferred_element_type=jnp.float32)  # (N, 2N)

    # --- estimator: JSD/NCE softplus loss -----------------------------------
    # loss = mean(softplus(-S_pos)) + mean(softplus(S_neg))
    #      = sum(softplus(sign * S)) / N^2   with sign = -1 on pos cols, +1 on neg.
    col  = lax.broadcasted_iota(jnp.int32, s.shape, 1)
    sign = jnp.where(col < N, -1.0, 1.0)
    z = sign * s
    # numerically stable softplus (exp goes to the EUP slot)
    sp = jnp.maximum(z, 0.0) + jnp.log1p(jnp.exp(-jnp.abs(z)))

    inv_pairs = 1.0 / float(N * N)
    loss_ref[0, 0] = jnp.sum(sp) * inv_pairs                # scalar -> SMEM


# ---------------------------------------------------------------------------
# Framework.forward equivalent (single pallas_call launch)
# ---------------------------------------------------------------------------
@jax.jit
def framework_forward(x, pos, neg, params):
    # Stack the three views and zero-pad the feature axis lane-dense (128).
    feats = jnp.concatenate([x, pos, neg], axis=0)          # (3N, F_IN)
    feats = jnp.pad(feats, ((0, 0), (0, FP - feats.shape[1])))

    vmem = pl.BlockSpec(memory_space=pltpu.MemorySpace.VMEM)
    smem = pl.BlockSpec(memory_space=pltpu.MemorySpace.SMEM)

    loss = pl.pallas_call(
        fused_forward_kernel,
        out_shape=jax.ShapeDtypeStruct((1, 1), jnp.float32),
        in_specs=[vmem, vmem, vmem, vmem, vmem, vmem],
        out_specs=smem,
    )(feats, params["w1"], params["b1"], params["w2"], params["b2"],
      params["wd"])

    # TODO(synk): masked (pos_mask/neg_mask) multi-graph path of get_anchor()
    #             (graphcl/gca samplers) is not reproduced here.
    return loss[0, 0]


def init_params():
    """Weights built directly at the lane-dense padded shapes (zero padding
    outside the logical F_IN x H / H x H blocks is semantics-preserving)."""
    k = jax.random.PRNGKey(42)
    k1, k2, k3 = jax.random.split(k, 3)

    def padded_weight(key, rows, cols, rows_p, cols_p, scale):
        w = jax.random.normal(key, (rows, cols), jnp.float32) * scale
        return jnp.pad(w, ((0, rows_p - rows), (0, cols_p - cols)))

    return {
        "w1": padded_weight(k1, F_IN, H, FP, HP, 1.0 / float(F_IN) ** 0.5),
        "b1": jnp.zeros((1, HP), jnp.float32),
        "w2": padded_weight(k2, H, H, HP, HP, 1.0 / float(H) ** 0.5),
        "b2": jnp.zeros((1, HP), jnp.float32),
        "wd": padded_weight(k3, H, H, HP, HP, 1.0 / float(H) ** 0.5),
    }


if __name__ == "__main__":
    key = jax.random.PRNGKey(0)
    kx, kp, kn = jax.random.split(key, 3)
    x   = jax.random.uniform(kx, (N, F_IN), jnp.float32)    # anchor view feats
    pos = jax.random.uniform(kp, (N, F_IN), jnp.float32)    # positive view
    neg = jax.random.uniform(kn, (N, F_IN), jnp.float32)    # negative view

    params = init_params()
    loss = framework_forward(x, pos, neg, params)
    loss = jax.block_until_ready(loss)
    assert loss.shape == () and bool(jnp.isfinite(loss))
    print("KERNEL_OK")
</pallas_src>

<mosaic_0001>
module attributes {stable_mosaic.version = 11 : i64} {
  func.func @fused_forward_kernel(%arg0: memref<96x128xf32, #tpu.memory_space<vmem>>, %arg1: memref<128x128xf32, #tpu.memory_space<vmem>>, %arg2: memref<1x128xf32, #tpu.memory_space<vmem>>, %arg3: memref<128x128xf32, #tpu.memory_space<vmem>>, %arg4: memref<1x128xf32, #tpu.memory_space<vmem>>, %arg5: memref<128x128xf32, #tpu.memory_space<vmem>>, %arg6: memref<1x1xf32, #tpu.memory_space<smem>>) attributes {dimension_semantics = [], scalar_prefetch = 0 : i64, scratch_operands = 0 : i64, tpu.core_type = #tpu.core_type<tc>} {
    %c0 = arith.constant 0 : index
    %c0_0 = arith.constant 0 : index
    %0 = vector.load %arg0[%c0, %c0_0] : memref<96x128xf32, #tpu.memory_space<vmem>>, vector<96x128xf32>
    %cst = arith.constant dense<0.000000e+00> : vector<96xf32>
    %1 = vector.multi_reduction <add>, %0, %cst [1] : vector<96x128xf32> to vector<96xf32>
    %2 = vector.shape_cast %1 : vector<96xf32> to vector<96x1xf32>
    %cst_1 = arith.constant 0.000000e+00 : f32
    %3 = vector.broadcast %cst_1 : f32 to vector<96x1xf32>
    %4 = arith.cmpf oeq, %2, %3 : vector<96x1xf32>
    %cst_2 = arith.constant 1.000000e+00 : f32
    %5 = vector.broadcast %cst_2 : f32 to vector<96x1xf32>
    %6 = arith.select %4, %5, %2 : vector<96x1xi1>, vector<96x1xf32>
    %7 = vector.broadcast %6 : vector<96x1xf32> to vector<96x128xf32>
    %8 = arith.divf %0, %7 : vector<96x128xf32>
    %c0_3 = arith.constant 0 : index
    %c0_4 = arith.constant 0 : index
    %9 = vector.load %arg1[%c0_3, %c0_4] : memref<128x128xf32, #tpu.memory_space<vmem>>, vector<128x128xf32>
    %cst_5 = arith.constant dense<0.000000e+00> : vector<96x128xf32>
    %10 = tpu.matmul %8, %9, %cst_5 {dimension_numbers = #tpu.dot_dimension_numbers<[1], [0], [0], [1], [0, 0, 1, 1], [], []>} : vector<96x128xf32>, vector<128x128xf32>, vector<96x128xf32> -> vector<96x128xf32>
    %c0_6 = arith.constant 0 : index
    %c0_7 = arith.constant 0 : index
    %11 = vector.load %arg2[%c0_6, %c0_7] : memref<1x128xf32, #tpu.memory_space<vmem>>, vector<1x128xf32>
    %12 = vector.broadcast %11 : vector<1x128xf32> to vector<96x128xf32>
    %13 = arith.addf %10, %12 : vector<96x128xf32>
    %cst_8 = arith.constant 0.000000e+00 : f32
    %14 = vector.broadcast %cst_8 : f32 to vector<96x128xf32>
    %15 = arith.maximumf %13, %14 : vector<96x128xf32>
    %c0_9 = arith.constant 0 : index
    %c0_10 = arith.constant 0 : index
    %16 = vector.load %arg3[%c0_9, %c0_10] : memref<128x128xf32, #tpu.memory_space<vmem>>, vector<128x128xf32>
    %cst_11 = arith.constant dense<0.000000e+00> : vector<96x128xf32>
    %17 = tpu.matmul %15, %16, %cst_11 {dimension_numbers = #tpu.dot_dimension_numbers<[1], [0], [0], [1], [0, 0, 1, 1], [], []>} : vector<96x128xf32>, vector<128x128xf32>, vector<96x128xf32> -> vector<96x128xf32>
    %c0_12 = arith.constant 0 : index
    %c0_13 = arith.constant 0 : index
    %18 = vector.load %arg4[%c0_12, %c0_13] : memref<1x128xf32, #tpu.memory_space<vmem>>, vector<1x128xf32>
    %19 = vector.broadcast %18 : vector<1x128xf32> to vector<96x128xf32>
    %20 = arith.addf %17, %19 : vector<96x128xf32>
    %21 = arith.mulf %20, %20 : vector<96x128xf32>
    %cst_14 = arith.constant dense<0.000000e+00> : vector<96xf32>
    %22 = vector.multi_reduction <add>, %21, %cst_14 [1] : vector<96x128xf32> to vector<96xf32>
    %23 = vector.shape_cast %22 : vector<96xf32> to vector<96x1xf32>
    %cst_15 = arith.constant 9.99999996E-13 : f32
    %24 = vector.broadcast %cst_15 : f32 to vector<96x1xf32>
    %25 = arith.addf %23, %24 : vector<96x1xf32>
    %26 = math.rsqrt %25 : vector<96x1xf32>
    %27 = vector.broadcast %26 : vector<96x1xf32> to vector<96x128xf32>
    %28 = arith.mulf %20, %27 : vector<96x128xf32>
    %29 = vector.extract_strided_slice %28 {offsets = [0, 0], sizes = [32, 128], strides = [1, 1]} : vector<96x128xf32> to vector<32x128xf32>
    %30 = vector.extract_strided_slice %28 {offsets = [32, 0], sizes = [64, 128], strides = [1, 1]} : vector<96x128xf32> to vector<64x128xf32>
    %c0_16 = arith.constant 0 : index
    %c0_17 = arith.constant 0 : index
    %31 = vector.load %arg5[%c0_16, %c0_17] : memref<128x128xf32, #tpu.memory_space<vmem>>, vector<128x128xf32>
    %cst_18 = arith.constant dense<0.000000e+00> : vector<32x128xf32>
    %32 = tpu.matmul %29, %31, %cst_18 {dimension_numbers = #tpu.dot_dimension_numbers<[1], [0], [0], [1], [0, 0, 1, 1], [], []>} : vector<32x128xf32>, vector<128x128xf32>, vector<32x128xf32> -> vector<32x128xf32>
    %cst_19 = arith.constant dense<0.000000e+00> : vector<32x64xf32>
    %33 = tpu.matmul %32, %30, %cst_19 {dimension_numbers = #tpu.dot_dimension_numbers<[1], [1], [0], [0], [0, 0, 1, 0], [], []>} : vector<32x128xf32>, vector<64x128xf32>, vector<32x64xf32> -> vector<32x64xf32>
    %34 = tpu.iota {dimensions = array<i32: 1>} : vector<32x64xi32>
    %c32_i32 = arith.constant 32 : i32
    %35 = vector.broadcast %c32_i32 : i32 to vector<32x64xi32>
    %36 = arith.cmpi slt, %34, %35 : vector<32x64xi32>
    %cst_20 = arith.constant -1.000000e+00 : f32
    %cst_21 = arith.constant 1.000000e+00 : f32
    %37 = vector.broadcast %cst_20 : f32 to vector<32x64xf32>
    %38 = vector.broadcast %cst_21 : f32 to vector<32x64xf32>
    %39 = arith.select %36, %37, %38 : vector<32x64xi1>, vector<32x64xf32>
    %40 = arith.mulf %39, %33 : vector<32x64xf32>
    %cst_22 = arith.constant 0.000000e+00 : f32
    %41 = vector.broadcast %cst_22 : f32 to vector<32x64xf32>
    %42 = arith.maximumf %40, %41 : vector<32x64xf32>
    %43 = math.absf %40 : vector<32x64xf32>
    %cst_23 = arith.constant 0.000000e+00 : f32
    %44 = vector.broadcast %cst_23 : f32 to vector<32x64xf32>
    %45 = arith.subf %44, %43 : vector<32x64xf32>
    %46 = math.exp %45 : vector<32x64xf32>
    %47 = math.log1p %46 : vector<32x64xf32>
    %48 = arith.addf %42, %47 : vector<32x64xf32>
    %49 = vector.shape_cast %48 : vector<32x64xf32> to vector<1x32x64xf32>
    %cst_24 = arith.constant dense<0.000000e+00> : vector<1xf32>
    %50 = vector.multi_reduction <add>, %49, %cst_24 [1, 2] : vector<1x32x64xf32> to vector<1xf32>
    %51 = vector.shape_cast %50 : vector<1xf32> to vector<1x1x1xf32>
    %52 = vector.extract %51[0, 0, 0] : f32 from vector<1x1x1xf32>
    %cst_25 = arith.constant 9.765625E-4 : f32
    %53 = arith.mulf %52, %cst_25 : f32
    %c0_26 = arith.constant 0 : index
    %c0_27 = arith.constant 0 : index
    %54 = memref.load %arg6[%c0_26, %c0_27] : memref<1x1xf32, #tpu.memory_space<smem>>
    memref.store %53, %arg6[%c0_26, %c0_27] : memref<1x1xf32, #tpu.memory_space<smem>>
    return
  }
}

</mosaic_0001>

<llo_original>
// kernel: framework_forward.1
$region0: #{framework_forward.1}
  #allocation0 [shape = 'u32[]', space=smem, size = 0x4, offset = 0x4, fixed_abs, tag = 'smem constant byte address 0x4 - core index']
  #allocation1 [shape = 'u32[144,128]{1,0:T(1,128)}', space=vmem, size = 0x12000, scoped, tag = 'internal scratch']
  %s0 = inlined_call_operand.vmem [shape: f32[96,128], index: 0, kind: input, shape index: {}]
  %s1 = inlined_call_operand.vmem [shape: f32[128,128], index: 1, kind: input, shape index: {}]
  %s2 = inlined_call_operand.vmem [shape: f32[1,128], index: 2, kind: input, shape index: {}]
  %s3 = inlined_call_operand.hbm [shape: f32[128,128], index: 3, kind: input, shape index: {}]
  %s4 = inlined_call_operand.vmem [shape: f32[1,128], index: 4, kind: input, shape index: {}]
  %s5 = inlined_call_operand.hbm [shape: f32[128,128], index: 5, kind: input, shape index: {}]
  %s6 = inlined_call_operand.hbm [shape: f32[1,1], index: 6, kind: output, shape index: {}]
  %s7 = sld [smem:[#allocation0]]
  $region42: #{framework_forward.1} parent=0
    _
  %s9 = ssub.s32 1, %s7
  %s10 = scalar_select 0, %s9, %s7
  $region1: #{framework_forward.1} parent=0
    #allocation2 [shape = 'u8[65536]{0}', space=vmem, size = 0x10000, scoped, tag = 'input window, operand 3, single buffered']
    #allocation3 [shape = 's32[1]{0}', space=sflag, size = 0x4, scoped, tag = 'scoped memory for framework_forward.1']
    #allocation4 [shape = 's32[1]{0}', space=sflag, size = 0x4, scoped, tag = 'scoped memory for framework_forward.1']
    #allocation5 [shape = 'u8[65536]{0}', space=vmem, size = 0x10000, scoped, tag = 'input window, operand 5, single buffered']
    #allocation6 [shape = 's32[1]{0}', space=sflag, size = 0x4, scoped, tag = 'scoped memory for framework_forward.1']
    #allocation7 [shape = 'u8[512]{0}', space=smem, size = 0x200, scoped, tag = 'output window, operand 0, single buffered']
    %11 = vsyncpa [#allocation3], 0
    %12 = vsyncpa [#allocation6], 0
    %13 = vsyncpa [#allocation4], 0
    // Predicated region
    $region2: #{framework_forward.1} parent=1 // pred_check
      _
    $region3: #{framework_forward.1} parent=1 // pred_check_branch
      %15 = sbr.rel (0) target = $region5
    $region4: #{framework_forward.1} parent=1 // pred_region
      _
    $region5: #{framework_forward.1} parent=1 // pred_fallthru
      _
    // Predicated region
    $region6: #{framework_forward.1} parent=1 // pred_check
      _
    $region7: #{framework_forward.1} parent=1 // pred_check_branch
      %17 = sbr.rel (0) target = $region9
    $region8: #{framework_forward.1} parent=1 // pred_region
      _
    $region9: #{framework_forward.1} parent=1 // pred_fallthru
      _
    // Predicated region
    $region10: #{framework_forward.1} parent=1 // pred_check
      _
    $region11: #{framework_forward.1} parent=1 // pred_check_branch
      %19 = sbr.rel (0) target = $region13
    $region12: #{framework_forward.1} parent=1 // pred_region
      _
    $region13: #{framework_forward.1} parent=1 // pred_fallthru
      _
    // Predicated region
    $region14: #{framework_forward.1} parent=1 // pred_check
      _
    $region15: #{framework_forward.1} parent=1 // pred_check_branch
      %21 = sbr.rel (0) target = $region17
    $region16: #{framework_forward.1} parent=1 // pred_region
      %s23 = ssub.s32 2048, 2048
      %24 = vsyncadd [#allocation3], %s23
      %s25 = sshll.u32 [#allocation2], 4
      %s26 = int_to_ptr.vmem [resolvable:$true] %s25
      %31 = dma.hbm_to_vmem [thread:$0]  %s3, 2048, %s26, [#allocation3], 128, 128, 8
    $region17: #{framework_forward.1} parent=1 // pred_fallthru
      _
    // Predicated region
    $region18: #{framework_forward.1} parent=1 // pred_check
      _
    $region19: #{framework_forward.1} parent=1 // pred_check_branch
      %33 = sbr.rel (0) target = $region21
    $region20: #{framework_forward.1} parent=1 // pred_region
      _
    $region21: #{framework_forward.1} parent=1 // pred_fallthru
      _
    // Predicated region
    $region22: #{framework_forward.1} parent=1 // pred_check
      _
    $region23: #{framework_forward.1} parent=1 // pred_check_branch
      %35 = sbr.rel (0) target = $region25
    $region24: #{framework_forward.1} parent=1 // pred_region
      %s37 = ssub.s32 2048, 2048
      %38 = vsyncadd [#allocation6], %s37
      %s39 = sshll.u32 [#allocation5], 4
      %s40 = int_to_ptr.vmem [resolvable:$true] %s39
      %45 = dma.hbm_to_vmem [thread:$0]  %s5, 2048, %s40, [#allocation6], 128, 128, 8
    $region25: #{framework_forward.1} parent=1 // pred_fallthru
      _
    // Predicated region
    $region26: #{framework_forward.1} parent=1 // pred_check
      _
    $region27: #{framework_forward.1} parent=1 // pred_check_branch
      %47 = sbr.rel (0) target = $region29
    $region28: #{framework_forward.1} parent=1 // pred_region
      %48 = dma.done [#allocation3], 2048
    $region29: #{framework_forward.1} parent=1 // pred_fallthru
      _
    // Predicated region
    $region30: #{framework_forward.1} parent=1 // pred_check
      _
    $region31: #{framework_forward.1} parent=1 // pred_check_branch
      %50 = sbr.rel (0) target = $region33
    $region32: #{framework_forward.1} parent=1 // pred_region
      %51 = dma.done [#allocation6], 2048
    $region33: #{framework_forward.1} parent=1 // pred_fallthru
      _
    %v52 = vld [vmem:[%s0] sm:$0xff]
    %v53 = vld [vmem:[%s0 + $0x8] sm:$0xff]
    %v54 = vld [vmem:[%s0 + $0x10] sm:$0xff]
    %v55 = vld [vmem:[%s0 + $0x18] sm:$0xff]
    %v56 = vld [vmem:[%s0 + $0x20] sm:$0xff]
    %v57 = vld [vmem:[%s0 + $0x28] sm:$0xff]
    %v58 = vld [vmem:[%s0 + $0x30] sm:$0xff]
    %v59 = vld [vmem:[%s0 + $0x38] sm:$0xff]
    %v60 = vld [vmem:[%s0 + $0x40] sm:$0xff]
    %v61 = vld [vmem:[%s0 + $0x48] sm:$0xff]
    %v62 = vld [vmem:[%s0 + $0x50] sm:$0xff]
    %v63 = vld [vmem:[%s0 + $0x58] sm:$0xff]
    %64 = vadd.xlane.f32.xlu0 %v52
    %v65 = vpop.xlane.xlu0 %64
    %66 = vadd.xlane.f32.xlu0 %v53
    %v67 = vpop.xlane.xlu0 %66
    %68 = vadd.xlane.f32.xlu0 %v54
    %v69 = vpop.xlane.xlu0 %68
    %70 = vadd.xlane.f32.xlu0 %v55
    %v71 = vpop.xlane.xlu0 %70
    %72 = vadd.xlane.f32.xlu0 %v56
    %v73 = vpop.xlane.xlu0 %72
    %74 = vadd.xlane.f32.xlu0 %v57
    %v75 = vpop.xlane.xlu0 %74
    %76 = vadd.xlane.f32.xlu0 %v58
    %v77 = vpop.xlane.xlu0 %76
    %78 = vadd.xlane.f32.xlu0 %v59
    %v79 = vpop.xlane.xlu0 %78
    %80 = vadd.xlane.f32.xlu0 %v60
    %v81 = vpop.xlane.xlu0 %80
    %82 = vadd.xlane.f32.xlu0 %v61
    %v83 = vpop.xlane.xlu0 %82
    %84 = vadd.xlane.f32.xlu0 %v62
    %v85 = vpop.xlane.xlu0 %84
    %86 = vadd.xlane.f32.xlu0 %v63
    %v87 = vpop.xlane.xlu0 %86
    %vm88 = vcmp.eq.f32.partialorder %v65, 0.0
    %vm89 = vcmp.eq.f32.partialorder %v67, 0.0
    %vm90 = vcmp.eq.f32.partialorder %v69, 0.0
    %vm91 = vcmp.eq.f32.partialorder %v71, 0.0
    %vm92 = vcmp.eq.f32.partialorder %v73, 0.0
    %vm93 = vcmp.eq.f32.partialorder %v75, 0.0
    %vm94 = vcmp.eq.f32.partialorder %v77, 0.0
    %vm95 = vcmp.eq.f32.partialorder %v79, 0.0
    %vm96 = vcmp.eq.f32.partialorder %v81, 0.0
    %vm97 = vcmp.eq.f32.partialorder %v83, 0.0
    %vm98 = vcmp.eq.f32.partialorder %v85, 0.0
    %vm99 = vcmp.eq.f32.partialorder %v87, 0.0
    %v100 = vsel %vm88, 1.0, %v65
    %v101 = vsel %vm89, 1.0, %v67
    %v102 = vsel %vm90, 1.0, %v69
    %v103 = vsel %vm91, 1.0, %v71
    %v104 = vsel %vm92, 1.0, %v73
    %v105 = vsel %vm93, 1.0, %v75
    %v106 = vsel %vm94, 1.0, %v77
    %v107 = vsel %vm95, 1.0, %v79
    %v108 = vsel %vm96, 1.0, %v81
    %v109 = vsel %vm97, 1.0, %v83
    %v110 = vsel %vm98, 1.0, %v85
    %v111 = vsel %vm99, 1.0, %v87
    %v112 = vrcp.pop %v100
    %v113 = vmul.f32 %v52, %v112
    %v114 = vrcp.pop %v101
    %v115 = vmul.f32 %v53, %v114
    %v116 = vrcp.pop %v102
    %v117 = vmul.f32 %v54, %v116
    %v118 = vrcp.pop %v103
    %v119 = vmul.f32 %v55, %v118
    %v120 = vrcp.pop %v104
    %v121 = vmul.f32 %v56, %v120
    %v122 = vrcp.pop %v105
    %v123 = vmul.f32 %v57, %v122
    %v124 = vrcp.pop %v106
    %v125 = vmul.f32 %v58, %v124
    %v126 = vrcp.pop %v107
    %v127 = vmul.f32 %v59, %v126
    %v128 = vrcp.pop %v108
    %v129 = vmul.f32 %v60, %v128
    %v130 = vrcp.pop %v109
    %v131 = vmul.f32 %v61, %v130
    %v132 = vrcp.pop %v110
    %v133 = vmul.f32 %v62, %v132
    %v134 = vrcp.pop %v111
    %v135 = vmul.f32 %v63, %v134
    %v136 = vld [vmem:[%s1] sm:$0xff]
    %v137 = vld [vmem:[%s1 + $0x8] sm:$0xff]
    %v138 = vld [vmem:[%s1 + $0x10] sm:$0xff]
    %v139 = vld [vmem:[%s1 + $0x18] sm:$0xff]
    %v140 = vld [vmem:[%s1 + $0x20] sm:$0xff]
    %v141 = vld [vmem:[%s1 + $0x28] sm:$0xff]
    %v142 = vld [vmem:[%s1 + $0x30] sm:$0xff]
    %v143 = vld [vmem:[%s1 + $0x38] sm:$0xff]
    %v144 = vld [vmem:[%s1 + $0x40] sm:$0xff]
    %v145 = vld [vmem:[%s1 + $0x48] sm:$0xff]
    %v146 = vld [vmem:[%s1 + $0x50] sm:$0xff]
    %v147 = vld [vmem:[%s1 + $0x58] sm:$0xff]
    %v148 = vld [vmem:[%s1 + $0x60] sm:$0xff]
    %v149 = vld [vmem:[%s1 + $0x68] sm:$0xff]
    %v150 = vld [vmem:[%s1 + $0x70] sm:$0xff]
    %v151 = vld [vmem:[%s1 + $0x78] sm:$0xff]
    %v152 = vld [vmem:[%s2] sm:$0x1]
    %v154 = vlaneseq
    %v155 = vshrl.u32 %v154, 7
    %v156 = vsub.s32 0, %v155
    %v157 = vrot.slane %v152, %v156
    %159 = vmatprep.subr.mxu0 0.0
    %160 = vmatpush1.msra.mxu0 %v151
    %161 = vmatprep.subr.mxu0 0.0
    %162 = vmatpush1.msra.mxu0 %v150
    %163 = vmatprep.subr.mxu0 0.0
    %164 = vmatpush1.msra.mxu0 %v149
    %165 = vmatprep.subr.mxu0 0.0
    %166 = vmatpush1.msra.mxu0 %v148
    %167 = vmatprep.subr.mxu0 0.0
    %168 = vmatpush1.msra.mxu0 %v147
    %169 = vmatprep.subr.mxu0 0.0
    %170 = vmatpush1.msra.mxu0 %v146
    %171 = vmatprep.subr.mxu0 0.0
    %172 = vmatpush1.msra.mxu0 %v145
    %173 = vmatprep.subr.mxu0 0.0
    %174 = vmatpush1.msra.mxu0 %v144
    %175 = vmatprep.subr.mxu0 0.0
    %176 = vmatpush1.msra.mxu0 %v143
    %177 = vmatprep.subr.mxu0 0.0
    %178 = vmatpush1.msra.mxu0 %v142
    %179 = vmatprep.subr.mxu0 0.0
    %180 = vmatpush1.msra.mxu0 %v141
    %181 = vmatprep.subr.mxu0 0.0
    %182 = vmatpush1.msra.mxu0 %v140
    %183 = vmatprep.subr.mxu0 0.0
    %184 = vmatpush1.msra.mxu0 %v139
    %185 = vmatprep.subr.mxu0 0.0
    %186 = vmatpush1.msra.mxu0 %v138
    %187 = vmatprep.subr.mxu0 0.0
    %188 = vmatpush1.msra.mxu0 %v137
    %189 = vmatprep.subr.mxu0 0.0
    %190 = vmatpush1.msra.mxu0 %v136
    %191 = vmatprep.subr.mxu0 0.0
    %192 = vmatpush2.msra.mxu0 0.0
    %193 = vmatprep.subr.mxu0 0.0
    %194 = vmatpush2.msra.mxu0 0.0
    %195 = vmatprep.subr.mxu0 0.0
    %196 = vmatpush2.msra.mxu0 0.0
    %197 = vmatprep.subr.mxu0 0.0
    %198 = vmatpush2.msra.mxu0 0.0
    %199 = vmatprep.subr.mxu0 0.0
    %200 = vmatpush2.msra.mxu0 0.0
    %201 = vmatprep.subr.mxu0 0.0
    %202 = vmatpush2.msra.mxu0 0.0
    %203 = vmatprep.subr.mxu0 0.0
    %204 = vmatpush2.msra.mxu0 0.0
    %205 = vmatprep.subr.mxu0 0.0
    %206 = vmatpush2.msra.mxu0 0.0
    %207 = vmatprep.subr.mxu0 0.0
    %208 = vmatpush2.msra.mxu0 0.0
    %209 = vmatprep.subr.mxu0 0.0
    %210 = vmatpush2.msra.mxu0 0.0
    %211 = vmatprep.subr.mxu0 0.0
    %212 = vmatpush2.msra.mxu0 0.0
    %213 = vmatprep.subr.mxu0 0.0
    %214 = vmatpush2.msra.mxu0 0.0
    %215 = vmatprep.subr.mxu0 0.0
    %216 = vmatpush2.msra.mxu0 0.0
    %217 = vmatprep.subr.mxu0 0.0
    %218 = vmatpush2.msra.mxu0 0.0
    %219 = vmatprep.subr.mxu0 0.0
    %220 = vmatpush2.msra.mxu0 0.0
    %221 = vmatprep.subr.mxu0 0.0
    %222 = vmatpush2.msra.mxu0 0.0
    %223 = vmatprep.mubr.f32.mxu0 0.0
    %224 = vmatmul.mubr.f32.gmra.mxu0 %v113
    %v225 = vpop.f32.mrf.mxu0
    %v226 = vadd.f32 %v157, %v225
    %v227 = vpop.f32.mrf.mxu0
    %228 = vmatprep.mubr.f32.mxu0 0.0
    %229 = vmatmul.mubr.f32.gmra.mxu0 %v115
    %v230 = vpop.f32.mrf.mxu0
    %v231 = vadd.f32 %v157, %v230
    %v232 = vpop.f32.mrf.mxu0
    %233 = vmatprep.mubr.f32.mxu0 0.0
    %234 = vmatmul.mubr.f32.gmra.mxu0 %v117
    %v235 = vpop.f32.mrf.mxu0
    %v236 = vadd.f32 %v157, %v235
    %v237 = vpop.f32.mrf.mxu0
    %238 = vmatprep.mubr.f32.mxu0 0.0
    %239 = vmatmul.mubr.f32.gmra.mxu0 %v119
    %v240 = vpop.f32.mrf.mxu0
    %v241 = vadd.f32 %v157, %v240
    %v242 = vpop.f32.mrf.mxu0
    %243 = vmatprep.mubr.f32.mxu0 0.0
    %244 = vmatmul.mubr.f32.gmra.mxu0 %v121
    %v245 = vpop.f32.mrf.mxu0
    %v246 = vadd.f32 %v157, %v245
    %v247 = vpop.f32.mrf.mxu0
    %248 = vmatprep.mubr.f32.mxu0 0.0
    %249 = vmatmul.mubr.f32.gmra.mxu0 %v123
    %v250 = vpop.f32.mrf.mxu0
    %v251 = vadd.f32 %v157, %v250
    %v252 = vpop.f32.mrf.mxu0
    %253 = vmatprep.mubr.f32.mxu0 0.0
    %254 = vmatmul.mubr.f32.gmra.mxu0 %v125
    %v255 = vpop.f32.mrf.mxu0
    %v256 = vadd.f32 %v157, %v255
    %v257 = vpop.f32.mrf.mxu0
    %258 = vmatprep.mubr.f32.mxu0 0.0
    %259 = vmatmul.mubr.f32.gmra.mxu0 %v127
    %v260 = vpop.f32.mrf.mxu0
    %v261 = vadd.f32 %v157, %v260
    %v262 = vpop.f32.mrf.mxu0
    %263 = vmatprep.mubr.f32.mxu0 0.0
    %264 = vmatmul.mubr.f32.gmra.mxu0 %v129
    %v265 = vpop.f32.mrf.mxu0
    %v266 = vadd.f32 %v157, %v265
    %v267 = vpop.f32.mrf.mxu0
    %268 = vmatprep.mubr.f32.mxu0 0.0
    %269 = vmatmul.mubr.f32.gmra.mxu0 %v131
    %v270 = vpop.f32.mrf.mxu0
    %v271 = vadd.f32 %v157, %v270
    %v272 = vpop.f32.mrf.mxu0
    %273 = vmatprep.mubr.f32.mxu0 0.0
    %274 = vmatmul.mubr.f32.gmra.mxu0 %v133
    %v275 = vpop.f32.mrf.mxu0
    %v276 = vadd.f32 %v157, %v275
    %v277 = vpop.f32.mrf.mxu0
    %278 = vmatprep.mubr.f32.mxu0 0.0
    %279 = vmatmul.mubr.f32.gmra.mxu0 %v135
    %v280 = vpop.f32.mrf.mxu0
    %v281 = vadd.f32 %v157, %v280
    %v282 = vpop.f32.mrf.mxu0
    %283 = vdwg.mxu0
    %v284 = vmax.f32 %v226, 0.0
    %v285 = vmax.f32 %v231, 0.0
    %v286 = vmax.f32 %v236, 0.0
    %v287 = vmax.f32 %v241, 0.0
    %v288 = vmax.f32 %v246, 0.0
    %v289 = vmax.f32 %v251, 0.0
    %v290 = vmax.f32 %v256, 0.0
    %v291 = vmax.f32 %v261, 0.0
    %v292 = vmax.f32 %v266, 0.0
    %v293 = vmax.f32 %v271, 0.0
    %v294 = vmax.f32 %v276, 0.0
    %v295 = vmax.f32 %v281, 0.0
    %v296 = vld [vmem:[#allocation2] sm:$0xff]
    %v297 = vld [vmem:[#allocation2 + $0x8] sm:$0xff]
    %v298 = vld [vmem:[#allocation2 + $0x10] sm:$0xff]
    %v299 = vld [vmem:[#allocation2 + $0x18] sm:$0xff]
    %v300 = vld [vmem:[#allocation2 + $0x20] sm:$0xff]
    %v301 = vld [vmem:[#allocation2 + $0x28] sm:$0xff]
    %v302 = vld [vmem:[#allocation2 + $0x30] sm:$0xff]
    %v303 = vld [vmem:[#allocation2 + $0x38] sm:$0xff]
    %v304 = vld [vmem:[#allocation2 + $0x40] sm:$0xff]
    %v305 = vld [vmem:[#allocation2 + $0x48] sm:$0xff]
    %v306 = vld [vmem:[#allocation2 + $0x50] sm:$0xff]
    %v307 = vld [vmem:[#allocation2 + $0x58] sm:$0xff]
    %v308 = vld [vmem:[#allocation2 + $0x60] sm:$0xff]
    %v309 = vld [vmem:[#allocation2 + $0x68] sm:$0xff]
    %v310 = vld [vmem:[#allocation2 + $0x70] sm:$0xff]
    %v311 = vld [vmem:[#allocation2 + $0x78] sm:$0xff]
    %v312 = vld [vmem:[%s4] sm:$0x1]
    %v314 = vlaneseq
    %v315 = vshrl.u32 %v314, 7
    %v316 = vsub.s32 0, %v315
    %v317 = vrot.slane %v312, %v316
    %319 = vmatprep.subr.mxu0 0.0
    %320 = vmatpush1.msra.mxu0 %v311
    %321 = vmatprep.subr.mxu0 0.0
    %322 = vmatpush1.msra.mxu0 %v310
    %323 = vmatprep.subr.mxu0 0.0
    %324 = vmatpush1.msra.mxu0 %v309
    %325 = vmatprep.subr.mxu0 0.0
    %326 = vmatpush1.msra.mxu0 %v308
    %327 = vmatprep.subr.mxu0 0.0
    %328 = vmatpush1.msra.mxu0 %v307
    %329 = vmatprep.subr.mxu0 0.0
    %330 = vmatpush1.msra.mxu0 %v306
    %331 = vmatprep.subr.mxu0 0.0
    %332 = vmatpush1.msra.mxu0 %v305
    %333 = vmatprep.subr.mxu0 0.0
    %334 = vmatpush1.msra.mxu0 %v304
    %335 = vmatprep.subr.mxu0 0.0
    %336 = vmatpush1.msra.mxu0 %v303
    %337 = vmatprep.subr.mxu0 0.0
    %338 = vmatpush1.msra.mxu0 %v302
    %339 = vmatprep.subr.mxu0 0.0
    %340 = vmatpush1.msra.mxu0 %v301
    %341 = vmatprep.subr.mxu0 0.0
    %342 = vmatpush1.msra.mxu0 %v300
    %343 = vmatprep.subr.mxu0 0.0
    %344 = vmatpush1.msra.mxu0 %v299
    %345 = vmatprep.subr.mxu0 0.0
    %346 = vmatpush1.msra.mxu0 %v298
    %347 = vmatprep.subr.mxu0 0.0
    %348 = vmatpush1.msra.mxu0 %v297
    %349 = vmatprep.subr.mxu0 0.0
    %350 = vmatpush1.msra.mxu0 %v296
    %351 = vmatprep.subr.mxu0 0.0
    %352 = vmatpush2.msra.mxu0 0.0
    %353 = vmatprep.subr.mxu0 0.0
    %354 = vmatpush2.msra.mxu0 0.0
    %355 = vmatprep.subr.mxu0 0.0
    %356 = vmatpush2.msra.mxu0 0.0
    %357 = vmatprep.subr.mxu0 0.0
    %358 = vmatpush2.msra.mxu0 0.0
    %359 = vmatprep.subr.mxu0 0.0
    %360 = vmatpush2.msra.mxu0 0.0
    %361 = vmatprep.subr.mxu0 0.0
    %362 = vmatpush2.msra.mxu0 0.0
    %363 = vmatprep.subr.mxu0 0.0
    %364 = vmatpush2.msra.mxu0 0.0
    %365 = vmatprep.subr.mxu0 0.0
    %366 = vmatpush2.msra.mxu0 0.0
    %367 = vmatprep.subr.mxu0 0.0
    %368 = vmatpush2.msra.mxu0 0.0
    %369 = vmatprep.subr.mxu0 0.0
    %370 = vmatpush2.msra.mxu0 0.0
    %371 = vmatprep.subr.mxu0 0.0
    %372 = vmatpush2.msra.mxu0 0.0
    %373 = vmatprep.subr.mxu0 0.0
    %374 = vmatpush2.msra.mxu0 0.0
    %375 = vmatprep.subr.mxu0 0.0
    %376 = vmatpush2.msra.mxu0 0.0
    %377 = vmatprep.subr.mxu0 0.0
    %378 = vmatpush2.msra.mxu0 0.0
    %379 = vmatprep.subr.mxu0 0.0
    %380 = vmatpush2.msra.mxu0 0.0
    %381 = vmatprep.subr.mxu0 0.0
    %382 = vmatpush2.msra.mxu0 0.0
    %383 = vmatprep.mubr.f32.mxu0 0.0
    %384 = vmatmul.mubr.f32.gmra.mxu0 %v284
    %v385 = vpop.f32.mrf.mxu0
    %v386 = vadd.f32 %v317, %v385
    %v387 = vpop.f32.mrf.mxu0
    %388 = vmatprep.mubr.f32.mxu0 0.0
    %389 = vmatmul.mubr.f32.gmra.mxu0 %v285
    %v390 = vpop.f32.mrf.mxu0
    %v391 = vadd.f32 %v317, %v390
    %v392 = vpop.f32.mrf.mxu0
    %393 = vmatprep.mubr.f32.mxu0 0.0
    %394 = vmatmul.mubr.f32.gmra.mxu0 %v286
    %v395 = vpop.f32.mrf.mxu0
    %v396 = vadd.f32 %v317, %v395
    %v397 = vpop.f32.mrf.mxu0
    %398 = vmatprep.mubr.f32.mxu0 0.0
    %399 = vmatmul.mubr.f32.gmra.mxu0 %v287
    %v400 = vpop.f32.mrf.mxu0
    %v401 = vadd.f32 %v317, %v400
    %v402 = vpop.f32.mrf.mxu0
    %403 = vmatprep.mubr.f32.mxu0 0.0
    %404 = vmatmul.mubr.f32.gmra.mxu0 %v288
    %v405 = vpop.f32.mrf.mxu0
    %v406 = vadd.f32 %v317, %v405
    %v407 = vpop.f32.mrf.mxu0
    %408 = vmatprep.mubr.f32.mxu0 0.0
    %409 = vmatmul.mubr.f32.gmra.mxu0 %v289
    %v410 = vpop.f32.mrf.mxu0
    %v411 = vadd.f32 %v317, %v410
    %v412 = vpop.f32.mrf.mxu0
    %413 = vmatprep.mubr.f32.mxu0 0.0
    %414 = vmatmul.mubr.f32.gmra.mxu0 %v290
    %v415 = vpop.f32.mrf.mxu0
    %v416 = vadd.f32 %v317, %v415
    %v417 = vpop.f32.mrf.mxu0
    %418 = vmatprep.mubr.f32.mxu0 0.0
    %419 = vmatmul.mubr.f32.gmra.mxu0 %v291
    %v420 = vpop.f32.mrf.mxu0
    %v421 = vadd.f32 %v317, %v420
    %v422 = vpop.f32.mrf.mxu0
    %423 = vmatprep.mubr.f32.mxu0 0.0
    %424 = vmatmul.mubr.f32.gmra.mxu0 %v292
    %v425 = vpop.f32.mrf.mxu0
    %v426 = vadd.f32 %v317, %v425
    %v427 = vpop.f32.mrf.mxu0
    %428 = vmatprep.mubr.f32.mxu0 0.0
    %429 = vmatmul.mubr.f32.gmra.mxu0 %v293
    %v430 = vpop.f32.mrf.mxu0
    %v431 = vadd.f32 %v317, %v430
    %v432 = vpop.f32.mrf.mxu0
    %433 = vmatprep.mubr.f32.mxu0 0.0
    %434 = vmatmul.mubr.f32.gmra.mxu0 %v294
    %v435 = vpop.f32.mrf.mxu0
    %v436 = vadd.f32 %v317, %v435
    %v437 = vpop.f32.mrf.mxu0
    %438 = vmatprep.mubr.f32.mxu0 0.0
    %439 = vmatmul.mubr.f32.gmra.mxu0 %v295
    %v440 = vpop.f32.mrf.mxu0
    %v441 = vadd.f32 %v317, %v440
    %v442 = vpop.f32.mrf.mxu0
    %443 = vdwg.mxu0
    %v444 = vmul.f32 %v386, %v386
    %v445 = vmul.f32 %v391, %v391
    %v446 = vmul.f32 %v396, %v396
    %v447 = vmul.f32 %v401, %v401
    %v448 = vmul.f32 %v406, %v406
    %v449 = vmul.f32 %v411, %v411
    %v450 = vmul.f32 %v416, %v416
    %v451 = vmul.f32 %v421, %v421
    %v452 = vmul.f32 %v426, %v426
    %v453 = vmul.f32 %v431, %v431
    %v454 = vmul.f32 %v436, %v436
    %v455 = vmul.f32 %v441, %v441
    %456 = vadd.xlane.f32.xlu0 %v444
    %v457 = vpop.xlane.xlu0 %456
    %458 = vadd.xlane.f32.xlu0 %v445
    %v459 = vpop.xlane.xlu0 %458
    %460 = vadd.xlane.f32.xlu0 %v446
    %v461 = vpop.xlane.xlu0 %460
    %462 = vadd.xlane.f32.xlu0 %v447
    %v463 = vpop.xlane.xlu0 %462
    %464 = vadd.xlane.f32.xlu0 %v448
    %v465 = vpop.xlane.xlu0 %464
    %466 = vadd.xlane.f32.xlu0 %v449
    %v467 = vpop.xlane.xlu0 %466
    %468 = vadd.xlane.f32.xlu0 %v450
    %v469 = vpop.xlane.xlu0 %468
    %470 = vadd.xlane.f32.xlu0 %v451
    %v471 = vpop.xlane.xlu0 %470
    %472 = vadd.xlane.f32.xlu0 %v452
    %v473 = vpop.xlane.xlu0 %472
    %474 = vadd.xlane.f32.xlu0 %v453
    %v475 = vpop.xlane.xlu0 %474
    %476 = vadd.xlane.f32.xlu0 %v454
    %v477 = vpop.xlane.xlu0 %476
    %478 = vadd.xlane.f32.xlu0 %v455
    %v479 = vpop.xlane.xlu0 %478
    %v480 = vadd.f32 %v457, 1e-12
    %v481 = vadd.f32 %v459, 1e-12
    %v482 = vadd.f32 %v461, 1e-12
    %v483 = vadd.f32 %v463, 1e-12
    %v484 = vadd.f32 %v465, 1e-12
    %v485 = vadd.f32 %v467, 1e-12
    %v486 = vadd.f32 %v469, 1e-12
    %v487 = vadd.f32 %v471, 1e-12
    %v488 = vadd.f32 %v473, 1e-12
    %v489 = vadd.f32 %v475, 1e-12
    %v490 = vadd.f32 %v477, 1e-12
    %v491 = vadd.f32 %v479, 1e-12
    %v492 = vrsqrt.pop %v480
    %v493 = vrsqrt.pop %v481
    %v494 = vrsqrt.pop %v482
    %v495 = vrsqrt.pop %v483
    %v496 = vrsqrt.pop %v484
    %v497 = vrsqrt.pop %v485
    %v498 = vrsqrt.pop %v486
    %v499 = vrsqrt.pop %v487
    %v500 = vrsqrt.pop %v488
    %v501 = vrsqrt.pop %v489
    %v502 = vrsqrt.pop %v490
    %v503 = vrsqrt.pop %v491
    %v504 = vmul.f32 %v386, %v492
    %v505 = vmul.f32 %v391, %v493
    %v506 = vmul.f32 %v396, %v494
    %v507 = vmul.f32 %v401, %v495
    %v508 = vmul.f32 %v406, %v496
    %v509 = vmul.f32 %v411, %v497
    %v510 = vmul.f32 %v416, %v498
    %v511 = vmul.f32 %v421, %v499
    %v512 = vmul.f32 %v426, %v500
    %v513 = vmul.f32 %v431, %v501
    %v514 = vmul.f32 %v436, %v502
    %v515 = vmul.f32 %v441, %v503
    %v516 = vld [vmem:[#allocation5] sm:$0xff]
    %v517 = vld [vmem:[#allocation5 + $0x8] sm:$0xff]
    %v518 = vld [vmem:[#allocation5 + $0x10] sm:$0xff]
    %v519 = vld [vmem:[#allocation5 + $0x18] sm:$0xff]
    %v520 = vld [vmem:[#allocation5 + $0x20] sm:$0xff]
    %v521 = vld [vmem:[#allocation5 + $0x28] sm:$0xff]
    %v522 = vld [vmem:[#allocation5 + $0x30] sm:$0xff]
    %v523 = vld [vmem:[#allocation5 + $0x38] sm:$0xff]
    %v524 = vld [vmem:[#allocation5 + $0x40] sm:$0xff]
    %v525 = vld [vmem:[#allocation5 + $0x48] sm:$0xff]
    %v526 = vld [vmem:[#allocation5 + $0x50] sm:$0xff]
    %v527 = vld [vmem:[#allocation5 + $0x58] sm:$0xff]
    %v528 = vld [vmem:[#allocation5 + $0x60] sm:$0xff]
    %v529 = vld [vmem:[#allocation5 + $0x68] sm:$0xff]
    %v530 = vld [vmem:[#allocation5 + $0x70] sm:$0xff]
    %v531 = vld [vmem:[#allocation5 + $0x78] sm:$0xff]
    %532 = vmatprep.subr.mxu0 0.0
    %533 = vmatpush1.msra.mxu0 %v531
    %534 = vmatprep.subr.mxu0 0.0
    %535 = vmatpush1.msra.mxu0 %v530
    %536 = vmatprep.subr.mxu0 0.0
    %537 = vmatpush1.msra.mxu0 %v529
    %538 = vmatprep.subr.mxu0 0.0
    %539 = vmatpush1.msra.mxu0 %v528
    %540 = vmatprep.subr.mxu0 0.0
    %541 = vmatpush1.msra.mxu0 %v527
    %542 = vmatprep.subr.mxu0 0.0
    %543 = vmatpush1.msra.mxu0 %v526
    %544 = vmatprep.subr.mxu0 0.0
    %545 = vmatpush1.msra.mxu0 %v525
    %546 = vmatprep.subr.mxu0 0.0
    %547 = vmatpush1.msra.mxu0 %v524
    %548 = vmatprep.subr.mxu0 0.0
    %549 = vmatpush1.msra.mxu0 %v523
    %550 = vmatprep.subr.mxu0 0.0
    %551 = vmatpush1.msra.mxu0 %v522
    %552 = vmatprep.subr.mxu0 0.0
    %553 = vmatpush1.msra.mxu0 %v521
    %554 = vmatprep.subr.mxu0 0.0
    %555 = vmatpush1.msra.mxu0 %v520
    %556 = vmatprep.subr.mxu0 0.0
    %557 = vmatpush1.msra.mxu0 %v519
    %558 = vmatprep.subr.mxu0 0.0
    %559 = vmatpush1.msra.mxu0 %v518
    %560 = vmatprep.subr.mxu0 0.0
    %561 = vmatpush1.msra.mxu0 %v517
    %562 = vmatprep.subr.mxu0 0.0
    %563 = vmatpush1.msra.mxu0 %v516
    %564 = vmatprep.subr.mxu0 0.0
    %565 = vmatpush2.msra.mxu0 0.0
    %566 = vmatprep.subr.mxu0 0.0
    %567 = vmatpush2.msra.mxu0 0.0
    %568 = vmatprep.subr.mxu0 0.0
    %569 = vmatpush2.msra.mxu0 0.0
    %570 = vmatprep.subr.mxu0 0.0
    %571 = vmatpush2.msra.mxu0 0.0
    %572 = vmatprep.subr.mxu0 0.0
    %573 = vmatpush2.msra.mxu0 0.0
    %574 = vmatprep.subr.mxu0 0.0
    %575 = vmatpush2.msra.mxu0 0.0
    %576 = vmatprep.subr.mxu0 0.0
    %577 = vmatpush2.msra.mxu0 0.0
    %578 = vmatprep.subr.mxu0 0.0
    %579 = vmatpush2.msra.mxu0 0.0
    %580 = vmatprep.subr.mxu0 0.0
    %581 = vmatpush2.msra.mxu0 0.0
    %582 = vmatprep.subr.mxu0 0.0
    %583 = vmatpush2.msra.mxu0 0.0
    %584 = vmatprep.subr.mxu0 0.0
    %585 = vmatpush2.msra.mxu0 0.0
    %586 = vmatprep.subr.mxu0 0.0
    %587 = vmatpush2.msra.mxu0 0.0
    %588 = vmatprep.subr.mxu0 0.0
    %589 = vmatpush2.msra.mxu0 0.0
    %590 = vmatprep.subr.mxu0 0.0
    %591 = vmatpush2.msra.mxu0 0.0
    %592 = vmatprep.subr.mxu0 0.0
    %593 = vmatpush2.msra.mxu0 0.0
    %594 = vmatprep.subr.mxu0 0.0
    %595 = vmatpush2.msra.mxu0 0.0
    %596 = vmatprep.mubr.f32.mxu0 0.0
    %597 = vmatmul.mubr.f32.gmra.mxu0 %v504
    %v598 = vpop.f32.mrf.mxu0
    %v599 = vadd.f32 0.0, %v598
    %v600 = vpop.f32.mrf.mxu0
    %601 = vmatprep.mubr.f32.mxu0 0.0
    %602 = vmatmul.mubr.f32.gmra.mxu0 %v505
    %v603 = vpop.f32.mrf.mxu0
    %v604 = vadd.f32 0.0, %v603
    %v605 = vpop.f32.mrf.mxu0
    %606 = vmatprep.mubr.f32.mxu0 0.0
    %607 = vmatmul.mubr.f32.gmra.mxu0 %v506
    %v608 = vpop.f32.mrf.mxu0
    %v609 = vadd.f32 0.0, %v608
    %v610 = vpop.f32.mrf.mxu0
    %611 = vmatprep.mubr.f32.mxu0 0.0
    %612 = vmatmul.mubr.f32.gmra.mxu0 %v507
    %v613 = vpop.f32.mrf.mxu0
    %v614 = vadd.f32 0.0, %v613
    %v615 = vpop.f32.mrf.mxu0
    %616 = vdwg.mxu0
    %617 = vmatprep.subr.mxu0 0.0
    %618 = vmatpush1.xpose.msra.mxu0 0.0
    %619 = vmatprep.subr.mxu0 0.0
    %620 = vmatpush1.xpose.msra.mxu0 0.0
    %621 = vmatprep.subr.mxu0 0.0
    %622 = vmatpush1.xpose.msra.mxu0 0.0
    %623 = vmatprep.subr.mxu0 0.0
    %624 = vmatpush1.xpose.msra.mxu0 0.0
    %625 = vmatprep.subr.mxu0 0.0
    %626 = vmatpush1.xpose.msra.mxu0 0.0
    %627 = vmatprep.subr.mxu0 0.0
    %628 = vmatpush1.xpose.msra.mxu0 0.0
    %629 = vmatprep.subr.mxu0 0.0
    %630 = vmatpush1.xpose.msra.mxu0 0.0
    %631 = vmatprep.subr.mxu0 0.0
    %632 = vmatpush1.xpose.msra.mxu0 0.0
    %633 = vmatprep.subr.mxu0 0.0
    %634 = vmatpush1.xpose.msra.mxu0 %v515
    %635 = vmatprep.subr.mxu0 0.0
    %636 = vmatpush1.xpose.msra.mxu0 %v514
    %637 = vmatprep.subr.mxu0 0.0
    %638 = vmatpush1.xpose.msra.mxu0 %v513
    %639 = vmatprep.subr.mxu0 0.0
    %640 = vmatpush1.xpose.msra.mxu0 %v512
    %641 = vmatprep.subr.mxu0 0.0
    %642 = vmatpush1.xpose.msra.mxu0 %v511
    %643 = vmatprep.subr.mxu0 0.0
    %644 = vmatpush1.xpose.msra.mxu0 %v510
    %645 = vmatprep.subr.mxu0 0.0
    %646 = vmatpush1.xpose.msra.mxu0 %v509
    %647 = vmatprep.subr.mxu0 0.0
    %648 = vmatpush1.xpose.msra.mxu0 %v508
    %649 = vmatprep.subr.mxu0 0.0
    %650 = vmatpush2.xpose.msra.mxu0 0.0
    %651 = vmatprep.subr.mxu0 0.0
    %652 = vmatpush2.xpose.msra.mxu0 0.0
    %653 = vmatprep.subr.mxu0 0.0
    %654 = vmatpush2.xpose.msra.mxu0 0.0
    %655 = vmatprep.subr.mxu0 0.0
    %656 = vmatpush2.xpose.msra.mxu0 0.0
    %657 = vmatprep.subr.mxu0 0.0
    %658 = vmatpush2.xpose.msra.mxu0 0.0
    %659 = vmatprep.subr.mxu0 0.0
    %660 = vmatpush2.xpose.msra.mxu0 0.0
    %661 = vmatprep.subr.mxu0 0.0
    %662 = vmatpush2.xpose.msra.mxu0 0.0
    %663 = vmatprep.subr.mxu0 0.0
    %664 = vmatpush2.xpose.msra.mxu0 0.0
    %665 = vmatprep.subr.mxu0 0.0
    %666 = vmatpush2.xpose.msra.mxu0 0.0
    %667 = vmatprep.subr.mxu0 0.0
    %668 = vmatpush2.xpose.msra.mxu0 0.0
    %669 = vmatprep.subr.mxu0 0.0
    %670 = vmatpush2.xpose.msra.mxu0 0.0
    %671 = vmatprep.subr.mxu0 0.0
    %672 = vmatpush2.xpose.msra.mxu0 0.0
    %673 = vmatprep.subr.mxu0 0.0
    %674 = vmatpush2.xpose.msra.mxu0 0.0
    %675 = vmatprep.subr.mxu0 0.0
    %676 = vmatpush2.xpose.msra.mxu0 0.0
    %677 = vmatprep.subr.mxu0 0.0
    %678 = vmatpush2.xpose.msra.mxu0 0.0
    %679 = vmatprep.subr.mxu0 0.0
    %680 = vmatpush2.xpose.msra.mxu0 0.0
    %681 = vmatprep.mubr.f32.mxu0 0.0
    %682 = vmatmul.mubr.f32.gmra.mxu0 %v599
    %v683 = vpop.f32.mrf.mxu0
    %v684 = vadd.f32 0.0, %v683
    %v685 = vpop.f32.mrf.mxu0
    %686 = vmatprep.mubr.f32.mxu0 0.0
    %687 = vmatmul.mubr.f32.gmra.mxu0 %v604
    %v688 = vpop.f32.mrf.mxu0
    %v689 = vadd.f32 0.0, %v688
    %v690 = vpop.f32.mrf.mxu0
    %691 = vmatprep.mubr.f32.mxu0 0.0
    %692 = vmatmul.mubr.f32.gmra.mxu0 %v609
    %v693 = vpop.f32.mrf.mxu0
    %v694 = vadd.f32 0.0, %v693
    %v695 = vpop.f32.mrf.mxu0
    %696 = vmatprep.mubr.f32.mxu0 0.0
    %697 = vmatmul.mubr.f32.gmra.mxu0 %v614
    %v698 = vpop.f32.mrf.mxu0
    %v699 = vadd.f32 0.0, %v698
    %v700 = vpop.f32.mrf.mxu0
    %701 = vdwg.mxu0
    %v702 = vlaneseq
    %v703 = vand.u32 %v702, 127
    %vm704 = vcmp.lt.s32.totalorder %v703, 32
    %v705 = vsel %vm704, -1.0, 1.0
    %v706 = vmul.f32 %v705, %v684
    %v707 = vmul.f32 %v705, %v689
    %v708 = vmul.f32 %v705, %v694
    %v709 = vmul.f32 %v705, %v699
    %v710 = vmax.f32 %v706, 0.0
    %v711 = vmax.f32 %v707, 0.0
    %v712 = vmax.f32 %v708, 0.0
    %v713 = vmax.f32 %v709, 0.0
    %v714 = vand.u32 2147483647, %v706
    %v715 = vand.u32 2147483647, %v707
    %v716 = vand.u32 2147483647, %v708
    %v717 = vand.u32 2147483647, %v709
    %v718 = vsub.f32 0.0, %v714
    %v719 = vsub.f32 0.0, %v715
    %v720 = vsub.f32 0.0, %v716
    %v721 = vsub.f32 0.0, %v717
    %v722 = vmul.f32 %v718, 1.442695
    %v723 = vpow.pop %v722
    %v724 = vmul.f32 %v719, 1.442695
    %v725 = vpow.pop %v724
    %v726 = vmul.f32 %v720, 1.442695
    %v727 = vpow.pop %v726
    %v728 = vmul.f32 %v721, 1.442695
    %v729 = vpow.pop %v728
    %v730 = vadd.f32 %v723, 1.0
    %v731 = vlog2.pop %v730
    %v732 = vmul.f32 %v731, 0.6931472
    %v733 = vmul.f32 -0.5, %v723
    %v734 = vadd.f32 %v733, 1.0
    %v735 = vmul.f32 %v734, %v723
    %v736 = vand.u32 2147483647, %v723
    %vm737 = vcmp.lt.f32.partialorder %v736, 0.0004427343
    %v738 = vsel %vm737, %v735, %v732
    %v739 = vadd.f32 %v725, 1.0
    %v740 = vlog2.pop %v739
    %v741 = vmul.f32 %v740, 0.6931472
    %v742 = vmul.f32 -0.5, %v725
    %v743 = vadd.f32 %v742, 1.0
    %v744 = vmul.f32 %v743, %v725
    %v745 = vand.u32 2147483647, %v725
    %vm746 = vcmp.lt.f32.partialorder %v745, 0.0004427343
    %v747 = vsel %vm746, %v744, %v741
    %v748 = vadd.f32 %v727, 1.0
    %v749 = vlog2.pop %v748
    %v750 = vmul.f32 %v749, 0.6931472
    %v751 = vmul.f32 -0.5, %v727
    %v752 = vadd.f32 %v751, 1.0
    %v753 = vmul.f32 %v752, %v727
    %v754 = vand.u32 2147483647, %v727
    %vm755 = vcmp.lt.f32.partialorder %v754, 0.0004427343
    %v756 = vsel %vm755, %v753, %v750
    %v757 = vadd.f32 %v729, 1.0
    %v758 = vlog2.pop %v757
    %v759 = vmul.f32 %v758, 0.6931472
    %v760 = vmul.f32 -0.5, %v729
    %v761 = vadd.f32 %v760, 1.0
    %v762 = vmul.f32 %v761, %v729
    %v763 = vand.u32 2147483647, %v729
    %vm764 = vcmp.lt.f32.partialorder %v763, 0.0004427343
    %v765 = vsel %vm764, %v762, %v759
    %v766 = vadd.f32 %v710, %v738
    %v767 = vadd.f32 %v711, %v747
    %v768 = vadd.f32 %v712, %v756
    %v769 = vadd.f32 %v713, %v765
    %vm770 = vcmask 523264
    %v771 = vsel %vm770, %v766, 0.0
    %v772 = vsel %vm770, %v767, 0.0
    %v773 = vadd.f32 %v771, %v772
    %v774 = vsel %vm770, %v768, 0.0
    %v775 = vadd.f32 %v773, %v774
    %v776 = vsel %vm770, %v769, 0.0
    %v777 = vadd.f32 %v775, %v776
    %778 = vadd.xlane.f32.xlu0 %v777
    %v779 = vpop.xlane.xlu0 %778
    %v780 = vrot.slane %v779, 4
    %v781 = vadd.f32 %v779, %v780
    %v782 = vrot.slane %v781, 2
    %v783 = vadd.f32 %v781, %v782
    %v784 = vrot.slane %v783, 1
    %v785 = vadd.f32 %v783, %v784
    %s786 = vtos %v785
    %s787 = smul.f32 %s786, 0.0009765625
    %s788 = scalar_lea.smem [#allocation7], 0
    %789 = sst [smem:[%s788]] %s787
    // Predicated region
    $region34: #{framework_forward.1} parent=1 // pred_check
      _
    $region35: #{framework_forward.1} parent=1 // pred_check_branch
      %791 = sbr.rel (0) target = $region37
    $region36: #{framework_forward.1} parent=1 // pred_region
      %s793 = ssub.s32 16, 16
      %794 = vsyncadd [#allocation4], %s793
      %797 = dma.smem_to_hbm [#allocation7], 16, %s6, [#allocation4]
    $region37: #{framework_forward.1} parent=1 // pred_fallthru
      _
    // Predicated region
    $region38: #{framework_forward.1} parent=1 // pred_check
      _
    $region39: #{framework_forward.1} parent=1 // pred_check_branch
      %799 = sbr.rel (0) target = $region41
    $region40: #{framework_forward.1} parent=1 // pred_region
      %800 = dma.done [#allocation4], 16
    $region41: #{framework_forward.1} parent=1 // pred_fallthru
      _
    %801 = sfence
    %802 = vsyncpa [#allocation3], 1
    %803 = vsyncpa [#allocation6], 1
    %804 = vsyncpa [#allocation4], 1

</llo_original>
